<compile_context>
chip_gen: v5e
topology: v5e:2x2
jax: 0.10.0
libtpu: 0.0.40
codegen_flags: <defaults>
</compile_context>

<pallas_src>
import jax
import jax.numpy as jnp
from jax import lax
from jax.experimental import pallas as pl
from jax.experimental.pallas import tpu as pltpu


def diff_unpool_kernel(xup_ref, xdown_ref, w_ref, bconv_ref, gamma_ref, beta_ref,
                       out_ref):
    x = xup_ref[...].astype(jnp.float32)          # (B, C, N)
    B, C, N = x.shape

    # ---- InstanceNorm1d (eps=1e-3, no affine) stats: per (b, c) over N ----
    mu = jnp.mean(x, axis=2, keepdims=True)                        # (B, C, 1)
    xc = x - mu                                                    # (B, C, N)
    var = jnp.mean(xc * xc, axis=2, keepdims=True)                 # (B, C, 1)
    r_in = lax.rsqrt(var + 1e-3)                                   # (B, C, 1)

    # ---- BatchNorm1d (training mode, eps=1e-5), folded analytically ----
    # IN output is exactly zero-mean per (b, c) => per-channel batch mean == 0.
    # Per-(b, c) mean of h_in^2 over N is var/(var + eps_in), so the per-channel
    # batch variance needs NO second pass over the (B, C, N) tensor.
    hsq_mean = var * (r_in * r_in)                                 # (B, C, 1)
    bvar = jnp.mean(hsq_mean, axis=0, keepdims=True)               # (1, C, 1)
    bn_scale = lax.rsqrt(bvar + 1e-5) * gamma_ref[...][None]       # (1, C, 1)
    beta = beta_ref[...][None]                                     # (1, C, 1)

    # ---- IN + BN + ReLU fused: one elementwise pass over (B, C, N) ----
    h = jnp.maximum(xc * (r_in * bn_scale) + beta, 0.0)            # (B, C, N)

    # ---- Conv1d(k=1): one lane-dense MXU matmul over all B*N columns ----
    h_flat = jnp.concatenate([h[b] for b in range(B)], axis=-1)    # (C, B*N)
    embed = jnp.dot(w_ref[...], h_flat,
                    preferred_element_type=jnp.float32) + bconv_ref[...]  # (M, B*N)

    # ---- softmax over M, denominator fused into the final scaling ----
    e = jnp.exp(embed - jnp.max(embed, axis=0, keepdims=True))     # (M, B*N)
    inv = pl.reciprocal(jnp.sum(e, axis=0, keepdims=True), approx=True)  # (1, B*N)

    # ---- out_b = x_down_b @ e_b ; combine into one lane-dense (Cd, B*N) store ----
    xd = xdown_ref[...].astype(jnp.float32)                        # (B, Cd, M)
    cols = [jnp.dot(xd[b], e[:, b * N:(b + 1) * N],
                    preferred_element_type=jnp.float32) for b in range(B)]
    out = jnp.concatenate(cols, axis=-1) * inv                     # (Cd, B*N)
    out_ref[...] = out.astype(out_ref.dtype)


def diff_unpool_forward(x_up, x_down, W, bconv, gamma, beta):
    B, C, N = x_up.shape
    Cd = x_down.shape[1]
    M = W.shape[0]

    # Parameters passed as 2D (trailing singleton) for TPU-friendly layouts.
    bconv2 = bconv.reshape(M, 1)
    gamma2 = gamma.reshape(C, 1)
    beta2 = beta.reshape(C, 1)

    full = lambda shape: pl.BlockSpec(shape, lambda i: (0,) * len(shape))

    out_flat = pl.pallas_call(
        diff_unpool_kernel,
        out_shape=jax.ShapeDtypeStruct((Cd, B * N), jnp.float32),
        grid=(1,),
        in_specs=[
            full((B, C, N)),      # x_up
            full((B, Cd, M)),     # x_down
            full((M, C)),         # conv weight
            full((M, 1)),         # conv bias
            full((C, 1)),         # batchnorm gamma
            full((C, 1)),         # batchnorm beta
        ],
        out_specs=full((Cd, B * N)),                 # lane-dense output slab
        compiler_params=pltpu.CompilerParams(
            dimension_semantics=("arbitrary",),
            vmem_limit_bytes=32 * 1024 * 1024,
        ),
    )(x_up, x_down, W, bconv2, gamma2, beta2)

    # (Cd, B*N) -> (B, Cd, N): pure layout plumbing outside the kernel.
    return out_flat.reshape(Cd, B, N).transpose(1, 0, 2)


def diff_unpool_reference(x_up, x_down, W, bconv, gamma, beta):
    x = x_up.astype(jnp.float32)
    mu = jnp.mean(x, axis=2, keepdims=True)
    var = jnp.mean((x - mu) ** 2, axis=2, keepdims=True)
    h = (x - mu) / jnp.sqrt(var + 1e-3)
    bmu = jnp.mean(h, axis=(0, 2), keepdims=True)
    bvar = jnp.mean((h - bmu) ** 2, axis=(0, 2), keepdims=True)
    h = (h - bmu) / jnp.sqrt(bvar + 1e-5) * gamma[None, :, None] + beta[None, :, None]
    h = jnp.maximum(h, 0.0)
    embed = jnp.einsum("mc,bcn->bmn", W, h) + bconv[None, :, None]
    S = jax.nn.softmax(embed, axis=1)
    return jnp.einsum("bcm,bmn->bcn", x_down.astype(jnp.float32), S)


if __name__ == "__main__":
    # Small shapes consistent with the module:
    B, C_in, N = 2, 32, 64
    output_points = 16
    C_down = 32

    key = jax.random.PRNGKey(0)
    k1, k2, k3, k4 = jax.random.split(key, 4)

    x_up = jax.random.normal(k1, (B, C_in, N), dtype=jnp.float32)
    x_down = jax.random.normal(k2, (B, C_down, output_points), dtype=jnp.float32)

    # Deterministic parameter init (shapes from the module's __init__):
    #   Conv1d(in_channel, output_points, kernel_size=1) -> W (M, C_in), bias (M,)
    #   BatchNorm1d(in_channel)                          -> gamma=1, beta=0 (C_in,)
    bound = 1.0 / jnp.sqrt(jnp.float32(C_in))
    W = jax.random.uniform(k3, (output_points, C_in), jnp.float32, -bound, bound)
    bconv = jax.random.uniform(k4, (output_points,), jnp.float32, -bound, bound)
    gamma = jnp.ones((C_in,), jnp.float32)
    beta = jnp.zeros((C_in,), jnp.float32)

    out = diff_unpool_forward(x_up, x_down, W, bconv, gamma, beta)
    out = jax.block_until_ready(out)

    ref = diff_unpool_reference(x_up, x_down, W, bconv, gamma, beta)
    assert out.shape == (B, C_down, N)
    assert jnp.allclose(out, ref, atol=2e-3, rtol=2e-3), "mismatch vs pure-JAX reference"

    print("KERNEL_OK")
</pallas_src>

<mosaic_0001>
module attributes {stable_mosaic.version = 11 : i64} {
  func.func @diff_unpool_kernel(%arg0: i32, %arg1: memref<2x32x64xf32, #tpu.memory_space<vmem>>, %arg2: memref<2x32x16xf32, #tpu.memory_space<vmem>>, %arg3: memref<16x32xf32, #tpu.memory_space<vmem>>, %arg4: memref<16x1xf32, #tpu.memory_space<vmem>>, %arg5: memref<32x1xf32, #tpu.memory_space<vmem>>, %arg6: memref<32x1xf32, #tpu.memory_space<vmem>>, %arg7: memref<32x128xf32, #tpu.memory_space<vmem>>) attributes {dimension_semantics = [#tpu.dimension_semantics<arbitrary>], iteration_bounds = array<i64: 1>, scalar_prefetch = 0 : i64, scratch_operands = 0 : i64, tpu.core_type = #tpu.core_type<tc>, window_params = [{pipeline_mode = #tpu.pipeline_mode<synchronous>, transform_indices = @transform_0, window_bounds = array<i64: 2, 32, 64>}, {pipeline_mode = #tpu.pipeline_mode<synchronous>, transform_indices = @transform_1, window_bounds = array<i64: 2, 32, 16>}, {pipeline_mode = #tpu.pipeline_mode<synchronous>, transform_indices = @transform_2, window_bounds = array<i64: 16, 32>}, {pipeline_mode = #tpu.pipeline_mode<synchronous>, transform_indices = @transform_3, window_bounds = array<i64: 16, 1>}, {pipeline_mode = #tpu.pipeline_mode<synchronous>, transform_indices = @transform_4, window_bounds = array<i64: 32, 1>}, {pipeline_mode = #tpu.pipeline_mode<synchronous>, transform_indices = @transform_5, window_bounds = array<i64: 32, 1>}, {pipeline_mode = #tpu.pipeline_mode<synchronous>, transform_indices = @transform_6, window_bounds = array<i64: 32, 128>}]} {
    %c0 = arith.constant 0 : index
    %c0_0 = arith.constant 0 : index
    %c0_1 = arith.constant 0 : index
    %0 = vector.load %arg1[%c0, %c0_0, %c0_1] : memref<2x32x64xf32, #tpu.memory_space<vmem>>, vector<2x32x64xf32>
    %cst = arith.constant dense<0.000000e+00> : vector<2x32xf32>
    %1 = vector.multi_reduction <add>, %0, %cst [2] : vector<2x32x64xf32> to vector<2x32xf32>
    %2 = vector.shape_cast %1 : vector<2x32xf32> to vector<2x32x1xf32>
    %cst_2 = arith.constant 6.400000e+01 : f32
    %3 = vector.broadcast %cst_2 : f32 to vector<2x32x1xf32>
    %4 = arith.divf %2, %3 : vector<2x32x1xf32>
    %5 = vector.broadcast %4 : vector<2x32x1xf32> to vector<2x32x64xf32>
    %6 = arith.subf %0, %5 : vector<2x32x64xf32>
    %7 = arith.mulf %6, %6 : vector<2x32x64xf32>
    %cst_3 = arith.constant dense<0.000000e+00> : vector<2x32xf32>
    %8 = vector.multi_reduction <add>, %7, %cst_3 [2] : vector<2x32x64xf32> to vector<2x32xf32>
    %9 = vector.shape_cast %8 : vector<2x32xf32> to vector<2x32x1xf32>
    %cst_4 = arith.constant 6.400000e+01 : f32
    %10 = vector.broadcast %cst_4 : f32 to vector<2x32x1xf32>
    %11 = arith.divf %9, %10 : vector<2x32x1xf32>
    %cst_5 = arith.constant 1.000000e-03 : f32
    %12 = vector.broadcast %cst_5 : f32 to vector<2x32x1xf32>
    %13 = arith.addf %11, %12 : vector<2x32x1xf32>
    %14 = math.rsqrt %13 : vector<2x32x1xf32>
    %15 = arith.mulf %14, %14 : vector<2x32x1xf32>
    %16 = arith.mulf %11, %15 : vector<2x32x1xf32>
    %cst_6 = arith.constant dense<0.000000e+00> : vector<32x1xf32>
    %17 = vector.multi_reduction <add>, %16, %cst_6 [0] : vector<2x32x1xf32> to vector<32x1xf32>
    %18 = vector.shape_cast %17 : vector<32x1xf32> to vector<1x32x1xf32>
    %cst_7 = arith.constant 2.000000e+00 : f32
    %19 = vector.broadcast %cst_7 : f32 to vector<1x32x1xf32>
    %20 = arith.divf %18, %19 : vector<1x32x1xf32>
    %cst_8 = arith.constant 9.99999974E-6 : f32
    %21 = vector.broadcast %cst_8 : f32 to vector<1x32x1xf32>
    %22 = arith.addf %20, %21 : vector<1x32x1xf32>
    %23 = math.rsqrt %22 : vector<1x32x1xf32>
    %c0_9 = arith.constant 0 : index
    %c0_10 = arith.constant 0 : index
    %24 = vector.load %arg5[%c0_9, %c0_10] : memref<32x1xf32, #tpu.memory_space<vmem>>, vector<32x1xf32>
    %25 = vector.shape_cast %24 : vector<32x1xf32> to vector<1x32x1xf32>
    %26 = arith.mulf %23, %25 : vector<1x32x1xf32>
    %c0_11 = arith.constant 0 : index
    %c0_12 = arith.constant 0 : index
    %27 = vector.load %arg6[%c0_11, %c0_12] : memref<32x1xf32, #tpu.memory_space<vmem>>, vector<32x1xf32>
    %28 = vector.shape_cast %27 : vector<32x1xf32> to vector<1x32x1xf32>
    %29 = vector.broadcast %26 : vector<1x32x1xf32> to vector<2x32x1xf32>
    %30 = arith.mulf %14, %29 : vector<2x32x1xf32>
    %31 = vector.broadcast %30 : vector<2x32x1xf32> to vector<2x32x64xf32>
    %32 = arith.mulf %6, %31 : vector<2x32x64xf32>
    %33 = vector.broadcast %28 : vector<1x32x1xf32> to vector<2x32x64xf32>
    %34 = arith.addf %32, %33 : vector<2x32x64xf32>
    %cst_13 = arith.constant 0.000000e+00 : f32
    %35 = vector.broadcast %cst_13 : f32 to vector<2x32x64xf32>
    %36 = arith.maximumf %34, %35 : vector<2x32x64xf32>
    %37 = vector.extract_strided_slice %36 {offsets = [0, 0, 0], sizes = [1, 32, 64], strides = [1, 1, 1]} : vector<2x32x64xf32> to vector<1x32x64xf32>
    %38 = vector.shape_cast %37 : vector<1x32x64xf32> to vector<32x64xf32>
    %39 = vector.extract_strided_slice %36 {offsets = [1, 0, 0], sizes = [1, 32, 64], strides = [1, 1, 1]} : vector<2x32x64xf32> to vector<1x32x64xf32>
    %40 = vector.shape_cast %39 : vector<1x32x64xf32> to vector<32x64xf32>
    %41 = tpu.concatenate %38, %40 in 1 : vector<32x64xf32>, vector<32x64xf32> -> vector<32x128xf32>
    %c0_14 = arith.constant 0 : index
    %c0_15 = arith.constant 0 : index
    %42 = vector.load %arg3[%c0_14, %c0_15] : memref<16x32xf32, #tpu.memory_space<vmem>>, vector<16x32xf32>
    %cst_16 = arith.constant dense<0.000000e+00> : vector<16x128xf32>
    %43 = tpu.matmul %42, %41, %cst_16 {dimension_numbers = #tpu.dot_dimension_numbers<[1], [0], [0], [1], [0, 0, 1, 1], [], []>} : vector<16x32xf32>, vector<32x128xf32>, vector<16x128xf32> -> vector<16x128xf32>
    %c0_17 = arith.constant 0 : index
    %c0_18 = arith.constant 0 : index
    %44 = vector.load %arg4[%c0_17, %c0_18] : memref<16x1xf32, #tpu.memory_space<vmem>>, vector<16x1xf32>
    %45 = vector.broadcast %44 : vector<16x1xf32> to vector<16x128xf32>
    %46 = arith.addf %43, %45 : vector<16x128xf32>
    %cst_19 = arith.constant dense<0xFF800000> : vector<128xf32>
    %47 = vector.multi_reduction <maximumf>, %46, %cst_19 [0] : vector<16x128xf32> to vector<128xf32>
    %48 = vector.shape_cast %47 : vector<128xf32> to vector<1x128xf32>
    %49 = vector.broadcast %48 : vector<1x128xf32> to vector<16x128xf32>
    %50 = arith.subf %46, %49 : vector<16x128xf32>
    %51 = math.exp %50 : vector<16x128xf32>
    %cst_20 = arith.constant dense<0.000000e+00> : vector<128xf32>
    %52 = vector.multi_reduction <add>, %51, %cst_20 [0] : vector<16x128xf32> to vector<128xf32>
    %53 = vector.shape_cast %52 : vector<128xf32> to vector<1x128xf32>
    %54 = tpu.reciprocal %53 {approx = true} : vector<1x128xf32> -> vector<1x128xf32>
    %c0_21 = arith.constant 0 : index
    %c0_22 = arith.constant 0 : index
    %c0_23 = arith.constant 0 : index
    %55 = vector.load %arg2[%c0_21, %c0_22, %c0_23] : memref<2x32x16xf32, #tpu.memory_space<vmem>>, vector<2x32x16xf32>
    %56 = vector.extract_strided_slice %55 {offsets = [0, 0, 0], sizes = [1, 32, 16], strides = [1, 1, 1]} : vector<2x32x16xf32> to vector<1x32x16xf32>
    %57 = vector.shape_cast %56 : vector<1x32x16xf32> to vector<32x16xf32>
    %58 = vector.extract_strided_slice %51 {offsets = [0, 0], sizes = [16, 64], strides = [1, 1]} : vector<16x128xf32> to vector<16x64xf32>
    %cst_24 = arith.constant dense<0.000000e+00> : vector<32x64xf32>
    %59 = tpu.matmul %57, %58, %cst_24 {dimension_numbers = #tpu.dot_dimension_numbers<[1], [0], [0], [1], [0, 0, 1, 1], [], []>} : vector<32x16xf32>, vector<16x64xf32>, vector<32x64xf32> -> vector<32x64xf32>
    %60 = vector.extract_strided_slice %55 {offsets = [1, 0, 0], sizes = [1, 32, 16], strides = [1, 1, 1]} : vector<2x32x16xf32> to vector<1x32x16xf32>
    %61 = vector.shape_cast %60 : vector<1x32x16xf32> to vector<32x16xf32>
    %62 = vector.extract_strided_slice %51 {offsets = [0, 64], sizes = [16, 64], strides = [1, 1]} : vector<16x128xf32> to vector<16x64xf32>
    %cst_25 = arith.constant dense<0.000000e+00> : vector<32x64xf32>
    %63 = tpu.matmul %61, %62, %cst_25 {dimension_numbers = #tpu.dot_dimension_numbers<[1], [0], [0], [1], [0, 0, 1, 1], [], []>} : vector<32x16xf32>, vector<16x64xf32>, vector<32x64xf32> -> vector<32x64xf32>
    %64 = tpu.concatenate %59, %63 in 1 : vector<32x64xf32>, vector<32x64xf32> -> vector<32x128xf32>
    %65 = vector.broadcast %54 : vector<1x128xf32> to vector<32x128xf32>
    %66 = arith.mulf %64, %65 : vector<32x128xf32>
    %c0_26 = arith.constant 0 : index
    %c0_27 = arith.constant 0 : index
    %67 = vector.load %arg7[%c0_26, %c0_27] : memref<32x128xf32, #tpu.memory_space<vmem>>, vector<32x128xf32>
    tpu.vector_store %arg7[%c0_26, %c0_27], %66 {strides = array<i32>} : memref<32x128xf32, #tpu.memory_space<vmem>>, vector<32x128xf32>,
    return
  }
  func.func @transform_0(%arg0: i32) -> (i32, i32, i32) {
    %c0_i32 = arith.constant 0 : i32
    %c0_i32_0 = arith.constant 0 : i32
    %c0_i32_1 = arith.constant 0 : i32
    %c0_i32_2 = arith.constant 0 : i32
    return %c0_i32, %c0_i32_0, %c0_i32_1 : i32, i32, i32
  }
  func.func @transform_1(%arg0: i32) -> (i32, i32, i32) {
    %c0_i32 = arith.constant 0 : i32
    %c0_i32_0 = arith.constant 0 : i32
    %c0_i32_1 = arith.constant 0 : i32
    %c0_i32_2 = arith.constant 0 : i32
    return %c0_i32, %c0_i32_0, %c0_i32_1 : i32, i32, i32
  }
  func.func @transform_2(%arg0: i32) -> (i32, i32) {
    %c0_i32 = arith.constant 0 : i32
    %c0_i32_0 = arith.constant 0 : i32
    %c0_i32_1 = arith.constant 0 : i32
    return %c0_i32, %c0_i32_0 : i32, i32
  }
  func.func @transform_3(%arg0: i32) -> (i32, i32) {
    %c0_i32 = arith.constant 0 : i32
    %c0_i32_0 = arith.constant 0 : i32
    %c0_i32_1 = arith.constant 0 : i32
    return %c0_i32, %c0_i32_0 : i32, i32
  }
  func.func @transform_4(%arg0: i32) -> (i32, i32) {
    %c0_i32 = arith.constant 0 : i32
    %c0_i32_0 = arith.constant 0 : i32
    %c0_i32_1 = arith.constant 0 : i32
    return %c0_i32, %c0_i32_0 : i32, i32
  }
  func.func @transform_5(%arg0: i32) -> (i32, i32) {
    %c0_i32 = arith.constant 0 : i32
    %c0_i32_0 = arith.constant 0 : i32
    %c0_i32_1 = arith.constant 0 : i32
    return %c0_i32, %c0_i32_0 : i32, i32
  }
  func.func @transform_6(%arg0: i32) -> (i32, i32) {
    %c0_i32 = arith.constant 0 : i32
    %c0_i32_0 = arith.constant 0 : i32
    %c0_i32_1 = arith.constant 0 : i32
    return %c0_i32, %c0_i32_0 : i32, i32
  }
}

</mosaic_0001>

<llo_original>
// kernel: tpu_custom_call.1
$region0: #{tpu_custom_call.1}
  #allocation0 [shape = 'u32[]', space=smem, size = 0x4, offset = 0x4, fixed_abs, tag = 'smem constant byte address 0x4 - core index']
  #allocation1 [shape = 'u32[72,128]{1,0:T(1,128)}', space=vmem, size = 0x9000, scoped, tag = 'internal scratch']
  %s0 = inlined_call_operand.vmem [shape: f32[2,32,64], index: 0, kind: input, shape index: {}]
  %s1 = inlined_call_operand.vmem [shape: f32[2,32,16], index: 1, kind: input, shape index: {}]
  %s2 = inlined_call_operand.vmem [shape: f32[16,32], index: 2, kind: input, shape index: {}]
  %s3 = inlined_call_operand.vmem [shape: f32[16,1], index: 3, kind: input, shape index: {}]
  %s4 = inlined_call_operand.vmem [shape: f32[32,1], index: 4, kind: input, shape index: {}]
  %s5 = inlined_call_operand.vmem [shape: f32[32,1], index: 5, kind: input, shape index: {}]
  %s6 = inlined_call_operand.hbm [shape: f32[32,128], index: 6, kind: output, shape index: {}]
  %s7 = sld [smem:[#allocation0]]
  $region34: #{tpu_custom_call.1} parent=0
    _
  %s9 = ssub.s32 1, %s7
  %s10 = scalar_select 0, %s9, %s7
  $region1: #{tpu_custom_call.1} parent=0
    #allocation2 [shape = 'u8[16384]{0}', space=vmem, size = 0x4000, scoped, tag = 'output window, operand 0, single buffered']
    #allocation3 [shape = 's32[1]{0}', space=sflag, size = 0x4, scoped, tag = 'scoped memory for tpu_custom_call.1']
    %11 = vsyncpa [#allocation3], 0
    // Predicated region
    $region2: #{tpu_custom_call.1} parent=1 // pred_check
      _
    $region3: #{tpu_custom_call.1} parent=1 // pred_check_branch
      %13 = sbr.rel (0) target = $region5
    $region4: #{tpu_custom_call.1} parent=1 // pred_region
      _
    $region5: #{tpu_custom_call.1} parent=1 // pred_fallthru
      _
    // Predicated region
    $region6: #{tpu_custom_call.1} parent=1 // pred_check
      _
    $region7: #{tpu_custom_call.1} parent=1 // pred_check_branch
      %15 = sbr.rel (0) target = $region9
    $region8: #{tpu_custom_call.1} parent=1 // pred_region
      _
    $region9: #{tpu_custom_call.1} parent=1 // pred_fallthru
      _
    // Predicated region
    $region10: #{tpu_custom_call.1} parent=1 // pred_check
      _
    $region11: #{tpu_custom_call.1} parent=1 // pred_check_branch
      %17 = sbr.rel (0) target = $region13
    $region12: #{tpu_custom_call.1} parent=1 // pred_region
      _
    $region13: #{tpu_custom_call.1} parent=1 // pred_fallthru
      _
    // Predicated region
    $region14: #{tpu_custom_call.1} parent=1 // pred_check
      _
    $region15: #{tpu_custom_call.1} parent=1 // pred_check_branch
      %19 = sbr.rel (0) target = $region17
    $region16: #{tpu_custom_call.1} parent=1 // pred_region
      _
    $region17: #{tpu_custom_call.1} parent=1 // pred_fallthru
      _
    // Predicated region
    $region18: #{tpu_custom_call.1} parent=1 // pred_check
      _
    $region19: #{tpu_custom_call.1} parent=1 // pred_check_branch
      %21 = sbr.rel (0) target = $region21
    $region20: #{tpu_custom_call.1} parent=1 // pred_region
      _
    $region21: #{tpu_custom_call.1} parent=1 // pred_fallthru
      _
    // Predicated region
    $region22: #{tpu_custom_call.1} parent=1 // pred_check
      _
    $region23: #{tpu_custom_call.1} parent=1 // pred_check_branch
      %23 = sbr.rel (0) target = $region25
    $region24: #{tpu_custom_call.1} parent=1 // pred_region
      _
    $region25: #{tpu_custom_call.1} parent=1 // pred_fallthru
      _
    %v24 = vld [vmem:[%s0] sm:$0xff]
    %v25 = vld [vmem:[%s0 + $0x8] sm:$0xff]
    %v26 = vld [vmem:[%s0 + $0x10] sm:$0xff]
    %v27 = vld [vmem:[%s0 + $0x18] sm:$0xff]
    %v28 = vld [vmem:[%s0 + $0x20] sm:$0xff]
    %v29 = vld [vmem:[%s0 + $0x28] sm:$0xff]
    %v30 = vld [vmem:[%s0 + $0x30] sm:$0xff]
    %v31 = vld [vmem:[%s0 + $0x38] sm:$0xff]
    %vm32 = vcmask 523264
    %v33 = vsel %vm32, %v24, 0.0
    %34 = vadd.xlane.f32.xlu0 %v33
    %v35 = vpop.xlane.xlu0 %34
    %v36 = vsel %vm32, %v25, 0.0
    %37 = vadd.xlane.f32.xlu0 %v36
    %v38 = vpop.xlane.xlu0 %37
    %v39 = vsel %vm32, %v26, 0.0
    %40 = vadd.xlane.f32.xlu0 %v39
    %v41 = vpop.xlane.xlu0 %40
    %v42 = vsel %vm32, %v27, 0.0
    %43 = vadd.xlane.f32.xlu0 %v42
    %v44 = vpop.xlane.xlu0 %43
    %v45 = vsel %vm32, %v28, 0.0
    %46 = vadd.xlane.f32.xlu0 %v45
    %v47 = vpop.xlane.xlu0 %46
    %v48 = vsel %vm32, %v29, 0.0
    %49 = vadd.xlane.f32.xlu0 %v48
    %v50 = vpop.xlane.xlu0 %49
    %v51 = vsel %vm32, %v30, 0.0
    %52 = vadd.xlane.f32.xlu0 %v51
    %v53 = vpop.xlane.xlu0 %52
    %v54 = vsel %vm32, %v31, 0.0
    %55 = vadd.xlane.f32.xlu0 %v54
    %v56 = vpop.xlane.xlu0 %55
    %v57 = vrcp.pop 64.0
    %v58 = vmul.f32 64.0, %v57
    %v59 = vsub.f32 1.0, %v58
    %v60 = vmul.f32 %v57, %v59
    %v61 = vadd.f32 %v57, %v60
    %vm62 = vweird.f32 %v57
    %v63 = vsel %vm62, %v57, %v61
    %v64 = vmul.f32 %v35, %v63
    %v65 = vmul.f32 %v38, %v63
    %v66 = vmul.f32 %v41, %v63
    %v67 = vmul.f32 %v44, %v63
    %v68 = vmul.f32 %v47, %v63
    %v69 = vmul.f32 %v50, %v63
    %v70 = vmul.f32 %v53, %v63
    %v71 = vmul.f32 %v56, %v63
    %v72 = vsub.f32 %v24, %v64
    %v73 = vsub.f32 %v25, %v65
    %v74 = vsub.f32 %v26, %v66
    %v75 = vsub.f32 %v27, %v67
    %v76 = vsub.f32 %v28, %v68
    %v77 = vsub.f32 %v29, %v69
    %v78 = vsub.f32 %v30, %v70
    %v79 = vsub.f32 %v31, %v71
    %v80 = vmul.f32 %v72, %v72
    %v81 = vmul.f32 %v73, %v73
    %v82 = vmul.f32 %v74, %v74
    %v83 = vmul.f32 %v75, %v75
    %v84 = vmul.f32 %v76, %v76
    %v85 = vmul.f32 %v77, %v77
    %v86 = vmul.f32 %v78, %v78
    %v87 = vmul.f32 %v79, %v79
    %v88 = vsel %vm32, %v80, 0.0
    %89 = vadd.xlane.f32.xlu0 %v88
    %v90 = vpop.xlane.xlu0 %89
    %v91 = vsel %vm32, %v81, 0.0
    %92 = vadd.xlane.f32.xlu0 %v91
    %v93 = vpop.xlane.xlu0 %92
    %v94 = vsel %vm32, %v82, 0.0
    %95 = vadd.xlane.f32.xlu0 %v94
    %v96 = vpop.xlane.xlu0 %95
    %v97 = vsel %vm32, %v83, 0.0
    %98 = vadd.xlane.f32.xlu0 %v97
    %v99 = vpop.xlane.xlu0 %98
    %v100 = vsel %vm32, %v84, 0.0
    %101 = vadd.xlane.f32.xlu0 %v100
    %v102 = vpop.xlane.xlu0 %101
    %v103 = vsel %vm32, %v85, 0.0
    %104 = vadd.xlane.f32.xlu0 %v103
    %v105 = vpop.xlane.xlu0 %104
    %v106 = vsel %vm32, %v86, 0.0
    %107 = vadd.xlane.f32.xlu0 %v106
    %v108 = vpop.xlane.xlu0 %107
    %v109 = vsel %vm32, %v87, 0.0
    %110 = vadd.xlane.f32.xlu0 %v109
    %v111 = vpop.xlane.xlu0 %110
    %v112 = vmul.f32 %v90, %v63
    %v113 = vmul.f32 %v93, %v63
    %v114 = vmul.f32 %v96, %v63
    %v115 = vmul.f32 %v99, %v63
    %v116 = vmul.f32 %v102, %v63
    %v117 = vmul.f32 %v105, %v63
    %v118 = vmul.f32 %v108, %v63
    %v119 = vmul.f32 %v111, %v63
    %v120 = vadd.f32 %v112, 0.001
    %v121 = vadd.f32 %v113, 0.001
    %v122 = vadd.f32 %v114, 0.001
    %v123 = vadd.f32 %v115, 0.001
    %v124 = vadd.f32 %v116, 0.001
    %v125 = vadd.f32 %v117, 0.001
    %v126 = vadd.f32 %v118, 0.001
    %v127 = vadd.f32 %v119, 0.001
    %v128 = vrsqrt.pop %v120
    %v129 = vmul.f32 %v128, %v120
    %v130 = vmul.f32 %v129, %v128
    %v131 = vmul.f32 0.5, %v130
    %v132 = vsub.f32 1.5, %v131
    %v133 = vmul.f32 %v128, %v132
    %vm134 = vweird.f32 %v120
    %vm135 = vweird.f32 %v128
    %vm136 = vmor %vm134, %vm135
    %v137 = vsel %vm136, %v128, %v133
    %v138 = vrsqrt.pop %v121
    %v139 = vmul.f32 %v138, %v121
    %v140 = vmul.f32 %v139, %v138
    %v141 = vmul.f32 0.5, %v140
    %v142 = vsub.f32 1.5, %v141
    %v143 = vmul.f32 %v138, %v142
    %vm144 = vweird.f32 %v121
    %vm145 = vweird.f32 %v138
    %vm146 = vmor %vm144, %vm145
    %v147 = vsel %vm146, %v138, %v143
    %v148 = vrsqrt.pop %v122
    %v149 = vmul.f32 %v148, %v122
    %v150 = vmul.f32 %v149, %v148
    %v151 = vmul.f32 0.5, %v150
    %v152 = vsub.f32 1.5, %v151
    %v153 = vmul.f32 %v148, %v152
    %vm154 = vweird.f32 %v122
    %vm155 = vweird.f32 %v148
    %vm156 = vmor %vm154, %vm155
    %v157 = vsel %vm156, %v148, %v153
    %v158 = vrsqrt.pop %v123
    %v159 = vmul.f32 %v158, %v123
    %v160 = vmul.f32 %v159, %v158
    %v161 = vmul.f32 0.5, %v160
    %v162 = vsub.f32 1.5, %v161
    %v163 = vmul.f32 %v158, %v162
    %vm164 = vweird.f32 %v123
    %vm165 = vweird.f32 %v158
    %vm166 = vmor %vm164, %vm165
    %v167 = vsel %vm166, %v158, %v163
    %v168 = vrsqrt.pop %v124
    %v169 = vmul.f32 %v168, %v124
    %v170 = vmul.f32 %v169, %v168
    %v171 = vmul.f32 0.5, %v170
    %v172 = vsub.f32 1.5, %v171
    %v173 = vmul.f32 %v168, %v172
    %vm174 = vweird.f32 %v124
    %vm175 = vweird.f32 %v168
    %vm176 = vmor %vm174, %vm175
    %v177 = vsel %vm176, %v168, %v173
    %v178 = vrsqrt.pop %v125
    %v179 = vmul.f32 %v178, %v125
    %v180 = vmul.f32 %v179, %v178
    %v181 = vmul.f32 0.5, %v180
    %v182 = vsub.f32 1.5, %v181
    %v183 = vmul.f32 %v178, %v182
    %vm184 = vweird.f32 %v125
    %vm185 = vweird.f32 %v178
    %vm186 = vmor %vm184, %vm185
    %v187 = vsel %vm186, %v178, %v183
    %v188 = vrsqrt.pop %v126
    %v189 = vmul.f32 %v188, %v126
    %v190 = vmul.f32 %v189, %v188
    %v191 = vmul.f32 0.5, %v190
    %v192 = vsub.f32 1.5, %v191
    %v193 = vmul.f32 %v188, %v192
    %vm194 = vweird.f32 %v126
    %vm195 = vweird.f32 %v188
    %vm196 = vmor %vm194, %vm195
    %v197 = vsel %vm196, %v188, %v193
    %v198 = vrsqrt.pop %v127
    %v199 = vmul.f32 %v198, %v127
    %v200 = vmul.f32 %v199, %v198
    %v201 = vmul.f32 0.5, %v200
    %v202 = vsub.f32 1.5, %v201
    %v203 = vmul.f32 %v198, %v202
    %vm204 = vweird.f32 %v127
    %vm205 = vweird.f32 %v198
    %vm206 = vmor %vm204, %vm205
    %v207 = vsel %vm206, %v198, %v203
    %v208 = vmul.f32 %v137, %v137
    %v209 = vmul.f32 %v147, %v147
    %v210 = vmul.f32 %v157, %v157
    %v211 = vmul.f32 %v167, %v167
    %v212 = vmul.f32 %v177, %v177
    %v213 = vmul.f32 %v187, %v187
    %v214 = vmul.f32 %v197, %v197
    %v215 = vmul.f32 %v207, %v207
    %v216 = vmul.f32 %v112, %v208
    %v217 = vmul.f32 %v113, %v209
    %v218 = vmul.f32 %v114, %v210
    %v219 = vmul.f32 %v115, %v211
    %v220 = vmul.f32 %v116, %v212
    %v221 = vmul.f32 %v117, %v213
    %v222 = vmul.f32 %v118, %v214
    %v223 = vmul.f32 %v119, %v215
    %v224 = vadd.f32 %v216, %v220
    %v225 = vadd.f32 %v217, %v221
    %v226 = vadd.f32 %v218, %v222
    %v227 = vadd.f32 %v219, %v223
    %v228 = vrcp.pop 2.0
    %v229 = vmul.f32 2.0, %v228
    %v230 = vsub.f32 1.0, %v229
    %v231 = vmul.f32 %v228, %v230
    %v232 = vadd.f32 %v228, %v231
    %vm233 = vweird.f32 %v228
    %v234 = vsel %vm233, %v228, %v232
    %v235 = vmul.f32 %v224, %v234
    %v236 = vmul.f32 %v225, %v234
    %v237 = vmul.f32 %v226, %v234
    %v238 = vmul.f32 %v227, %v234
    %v239 = vadd.f32 %v235, 1e-05
    %v240 = vadd.f32 %v236, 1e-05
    %v241 = vadd.f32 %v237, 1e-05
    %v242 = vadd.f32 %v238, 1e-05
    %v243 = vrsqrt.pop %v239
    %v244 = vmul.f32 %v243, %v239
    %v245 = vmul.f32 %v244, %v243
    %v246 = vmul.f32 0.5, %v245
    %v247 = vsub.f32 1.5, %v246
    %v248 = vmul.f32 %v243, %v247
    %vm249 = vweird.f32 %v239
    %vm250 = vweird.f32 %v243
    %vm251 = vmor %vm249, %vm250
    %v252 = vsel %vm251, %v243, %v248
    %v253 = vrsqrt.pop %v240
    %v254 = vmul.f32 %v253, %v240
    %v255 = vmul.f32 %v254, %v253
    %v256 = vmul.f32 0.5, %v255
    %v257 = vsub.f32 1.5, %v256
    %v258 = vmul.f32 %v253, %v257
    %vm259 = vweird.f32 %v240
    %vm260 = vweird.f32 %v253
    %vm261 = vmor %vm259, %vm260
    %v262 = vsel %vm261, %v253, %v258
    %v263 = vrsqrt.pop %v241
    %v264 = vmul.f32 %v263, %v241
    %v265 = vmul.f32 %v264, %v263
    %v266 = vmul.f32 0.5, %v265
    %v267 = vsub.f32 1.5, %v266
    %v268 = vmul.f32 %v263, %v267
    %vm269 = vweird.f32 %v241
    %vm270 = vweird.f32 %v263
    %vm271 = vmor %vm269, %vm270
    %v272 = vsel %vm271, %v263, %v268
    %v273 = vrsqrt.pop %v242
    %v274 = vmul.f32 %v273, %v242
    %v275 = vmul.f32 %v274, %v273
    %v276 = vmul.f32 0.5, %v275
    %v277 = vsub.f32 1.5, %v276
    %v278 = vmul.f32 %v273, %v277
    %vm279 = vweird.f32 %v242
    %vm280 = vweird.f32 %v273
    %vm281 = vmor %vm279, %vm280
    %v282 = vsel %vm281, %v273, %v278
    %v283 = vld [vmem:[%s4] sm:$0xff]
    %v284 = vld [vmem:[%s4 + $0x8] sm:$0xff]
    %v285 = vld [vmem:[%s4 + $0x10] sm:$0xff]
    %v286 = vld [vmem:[%s4 + $0x18] sm:$0xff]
    %v287 = vmul.f32 %v252, %v283
    %v288 = vmul.f32 %v262, %v284
    %v289 = vmul.f32 %v272, %v285
    %v290 = vmul.f32 %v282, %v286
    %v291 = vld [vmem:[%s5] sm:$0xff]
    %v292 = vld [vmem:[%s5 + $0x8] sm:$0xff]
    %v293 = vld [vmem:[%s5 + $0x10] sm:$0xff]
    %v294 = vld [vmem:[%s5 + $0x18] sm:$0xff]
    %v295 = vmul.f32 %v137, %v287
    %v296 = vmul.f32 %v147, %v288
    %v297 = vmul.f32 %v157, %v289
    %v298 = vmul.f32 %v167, %v290
    %v299 = vmul.f32 %v177, %v287
    %v300 = vmul.f32 %v187, %v288
    %v301 = vmul.f32 %v197, %v289
    %v302 = vmul.f32 %v207, %v290
    %304 = vset.pattern.permute.xlu0 0
    %305 = vperm.xlu0 %304, %v295
    %v306 = vpop.permute.xlu0 %305
    %309 = vset.pattern.permute.xlu0 0
    %310 = vperm.xlu0 %309, %v296
    %v311 = vpop.permute.xlu0 %310
    %314 = vset.pattern.permute.xlu0 0
    %315 = vperm.xlu0 %314, %v297
    %v316 = vpop.permute.xlu0 %315
    %319 = vset.pattern.permute.xlu0 0
    %320 = vperm.xlu0 %319, %v298
    %v321 = vpop.permute.xlu0 %320
    %324 = vset.pattern.permute.xlu0 0
    %325 = vperm.xlu0 %324, %v299
    %v326 = vpop.permute.xlu0 %325
    %329 = vset.pattern.permute.xlu0 0
    %330 = vperm.xlu0 %329, %v300
    %v331 = vpop.permute.xlu0 %330
    %334 = vset.pattern.permute.xlu0 0
    %335 = vperm.xlu0 %334, %v301
    %v336 = vpop.permute.xlu0 %335
    %339 = vset.pattern.permute.xlu0 0
    %340 = vperm.xlu0 %339, %v302
    %v341 = vpop.permute.xlu0 %340
    %v343 = vmul.f32 %v72, %v306
    %v344 = vmul.f32 %v73, %v311
    %v345 = vmul.f32 %v74, %v316
    %v346 = vmul.f32 %v75, %v321
    %v347 = vmul.f32 %v76, %v326
    %v348 = vmul.f32 %v77, %v331
    %v349 = vmul.f32 %v78, %v336
    %v350 = vmul.f32 %v79, %v341
    %352 = vset.pattern.permute.xlu0 0
    %353 = vperm.xlu0 %352, %v291
    %v354 = vpop.permute.xlu0 %353
    %357 = vset.pattern.permute.xlu0 0
    %358 = vperm.xlu0 %357, %v292
    %v359 = vpop.permute.xlu0 %358
    %362 = vset.pattern.permute.xlu0 0
    %363 = vperm.xlu0 %362, %v293
    %v364 = vpop.permute.xlu0 %363
    %367 = vset.pattern.permute.xlu0 0
    %368 = vperm.xlu0 %367, %v294
    %v369 = vpop.permute.xlu0 %368
    %v371 = vadd.f32 %v343, %v354
    %v372 = vadd.f32 %v344, %v359
    %v373 = vadd.f32 %v345, %v364
    %v374 = vadd.f32 %v346, %v369
    %v375 = vadd.f32 %v347, %v354
    %v376 = vadd.f32 %v348, %v359
    %v377 = vadd.f32 %v349, %v364
    %v378 = vadd.f32 %v350, %v369
    %v379 = vmax.f32 %v371, 0.0
    %v380 = vmax.f32 %v372, 0.0
    %v381 = vmax.f32 %v373, 0.0
    %v382 = vmax.f32 %v374, 0.0
    %v383 = vmax.f32 %v375, 0.0
    %v384 = vmax.f32 %v376, 0.0
    %v385 = vmax.f32 %v377, 0.0
    %v386 = vmax.f32 %v378, 0.0
    %391 = vrot.lane.b32.xlu0 %v383, 64
    %v392 = vpop.permute.xlu0 %391
    %393 = vrot.lane.b32.xlu0 %v384, 64
    %v394 = vpop.permute.xlu0 %393
    %395 = vrot.lane.b32.xlu0 %v385, 64
    %v396 = vpop.permute.xlu0 %395
    %397 = vrot.lane.b32.xlu0 %v386, 64
    %v398 = vpop.permute.xlu0 %397
    %v403 = vsel %vm32, %v379, %v392
    %v404 = vsel %vm32, %v380, %v394
    %v405 = vsel %vm32, %v381, %v396
    %v406 = vsel %vm32, %v382, %v398
    %v407 = vld [vmem:[%s2] sm:$0xff]
    %v408 = vld [vmem:[%s2 + $0x8] sm:$0xff]
    %v409 = vld [vmem:[%s3] sm:$0xff]
    %v410 = vld [vmem:[%s3 + $0x8] sm:$0xff]
    %412 = vset.pattern.permute.xlu0 0
    %413 = vperm.xlu0 %412, %v409
    %v414 = vpop.permute.xlu0 %413
    %417 = vset.pattern.permute.xlu0 0
    %418 = vperm.xlu0 %417, %v410
    %v419 = vpop.permute.xlu0 %418
    %vm421 = vcmask 261120
    %v423 = vsel %vm421, %v407, 0
    %v426 = vsel %vm421, %v408, 0
    %428 = vmatpush.msra.mxu0 0.0
    %429 = vmatpush.msra.mxu0 0.0
    %430 = vmatpush.msra.mxu0 0.0
    %431 = vmatpush.msra.mxu0 0.0
    %432 = vmatpush.msra.mxu0 0.0
    %433 = vmatpush.msra.mxu0 0.0
    %434 = vmatpush.msra.mxu0 0.0
    %435 = vmatpush.msra.mxu0 0.0
    %436 = vmatpush.msra.mxu0 0.0
    %437 = vmatpush.msra.mxu0 0.0
    %438 = vmatpush.msra.mxu0 0.0
    %439 = vmatpush.msra.mxu0 0.0
    %440 = vmatpush.msra.mxu0 %v406
    %441 = vmatpush.msra.mxu0 %v405
    %442 = vmatpush.msra.mxu0 %v404
    %443 = vmatpush.msra.mxu0 %v403
    %444 = vmatmul.f32.gmra.mxu0 %v423
    %v445 = vpop.f32.mrf.mxu0
    %v446 = vadd.f32 %v414, %v445
    %447 = vmatmul.f32.gmra.mxu0 %v426
    %v448 = vpop.f32.mrf.mxu0
    %v449 = vadd.f32 %v419, %v448
    %450 = vdwg.mxu0
    %v451 = vmax.f32 %v446, %v449
    %v452 = vrot.slane %v451, 4
    %v453 = vmax.f32 %v451, %v452
    %v454 = vrot.slane %v453, 2
    %v455 = vmax.f32 %v453, %v454
    %v456 = vrot.slane %v455, 1
    %v457 = vmax.f32 %v455, %v456
    %v458 = vsub.f32 %v446, %v457
    %v459 = vsub.f32 %v449, %v457
    %v460 = vmul.f32 %v458, 1.442695
    %v461 = vpow.pop %v460
    %v462 = vmul.f32 %v459, 1.442695
    %v463 = vpow.pop %v462
    %v464 = vadd.f32 %v461, %v463
    %v465 = vrot.slane %v464, 4
    %v466 = vadd.f32 %v464, %v465
    %v467 = vrot.slane %v466, 2
    %v468 = vadd.f32 %v466, %v467
    %v469 = vrot.slane %v468, 1
    %v470 = vadd.f32 %v468, %v469
    %v471 = vrcp.pop %v470
    %v472 = vld [vmem:[%s1] sm:$0xff]
    %v473 = vld [vmem:[%s1 + $0x8] sm:$0xff]
    %v474 = vld [vmem:[%s1 + $0x10] sm:$0xff]
    %v475 = vld [vmem:[%s1 + $0x18] sm:$0xff]
    %v476 = vld [vmem:[%s1 + $0x20] sm:$0xff]
    %v477 = vld [vmem:[%s1 + $0x28] sm:$0xff]
    %v478 = vld [vmem:[%s1 + $0x30] sm:$0xff]
    %v479 = vld [vmem:[%s1 + $0x38] sm:$0xff]
    %vm480 = vcmask 130048
    %v482 = vsel %vm480, %v472, 0
    %v485 = vsel %vm480, %v473, 0
    %v488 = vsel %vm480, %v474, 0
    %v491 = vsel %vm480, %v475, 0
    %493 = vmatpush.msra.mxu0 0.0
    %494 = vmatpush.msra.mxu0 0.0
    %495 = vmatpush.msra.mxu0 0.0
    %496 = vmatpush.msra.mxu0 0.0
    %497 = vmatpush.msra.mxu0 0.0
    %498 = vmatpush.msra.mxu0 0.0
    %499 = vmatpush.msra.mxu0 0.0
    %500 = vmatpush.msra.mxu0 0.0
    %501 = vmatpush.msra.mxu0 0.0
    %502 = vmatpush.msra.mxu0 0.0
    %503 = vmatpush.msra.mxu0 0.0
    %504 = vmatpush.msra.mxu0 0.0
    %505 = vmatpush.msra.mxu0 0.0
    %506 = vmatpush.msra.mxu0 0.0
    %507 = vmatpush.msra.mxu0 %v463
    %508 = vmatpush.msra.mxu0 %v461
    %509 = vmatmul.f32.gmra.mxu0 %v482
    %v510 = vpop.f32.mrf.mxu0
    %v511 = vadd.f32 0.0, %v510
    %512 = vmatmul.f32.gmra.mxu0 %v485
    %v513 = vpop.f32.mrf.mxu0
    %v514 = vadd.f32 0.0, %v513
    %515 = vmatmul.f32.gmra.mxu0 %v488
    %v516 = vpop.f32.mrf.mxu0
    %v517 = vadd.f32 0.0, %v516
    %518 = vmatmul.f32.gmra.mxu0 %v491
    %v519 = vpop.f32.mrf.mxu0
    %v520 = vadd.f32 0.0, %v519
    %521 = vdwg.mxu0
    %524 = vrot.lane.b32.xlu0 %v461, 64
    %v525 = vpop.permute.xlu0 %524
    %526 = vrot.lane.b32.xlu0 %v463, 64
    %v527 = vpop.permute.xlu0 %526
    %v531 = vsel %vm480, %v476, 0
    %v534 = vsel %vm480, %v477, 0
    %v537 = vsel %vm480, %v478, 0
    %v540 = vsel %vm480, %v479, 0
    %542 = vmatpush.msra.mxu0 0.0
    %543 = vmatpush.msra.mxu0 0.0
    %544 = vmatpush.msra.mxu0 0.0
    %545 = vmatpush.msra.mxu0 0.0
    %546 = vmatpush.msra.mxu0 0.0
    %547 = vmatpush.msra.mxu0 0.0
    %548 = vmatpush.msra.mxu0 0.0
    %549 = vmatpush.msra.mxu0 0.0
    %550 = vmatpush.msra.mxu0 0.0
    %551 = vmatpush.msra.mxu0 0.0
    %552 = vmatpush.msra.mxu0 0.0
    %553 = vmatpush.msra.mxu0 0.0
    %554 = vmatpush.msra.mxu0 0.0
    %555 = vmatpush.msra.mxu0 0.0
    %556 = vmatpush.msra.mxu0 %v527
    %557 = vmatpush.msra.mxu0 %v525
    %558 = vmatmul.f32.gmra.mxu0 %v531
    %v559 = vpop.f32.mrf.mxu0
    %v560 = vadd.f32 0.0, %v559
    %561 = vmatmul.f32.gmra.mxu0 %v534
    %v562 = vpop.f32.mrf.mxu0
    %v563 = vadd.f32 0.0, %v562
    %564 = vmatmul.f32.gmra.mxu0 %v537
    %v565 = vpop.f32.mrf.mxu0
    %v566 = vadd.f32 0.0, %v565
    %567 = vmatmul.f32.gmra.mxu0 %v540
    %v568 = vpop.f32.mrf.mxu0
    %v569 = vadd.f32 0.0, %v568
    %570 = vdwg.mxu0
    %575 = vrot.lane.b32.xlu0 %v560, 64
    %v576 = vpop.permute.xlu0 %575
    %577 = vrot.lane.b32.xlu0 %v563, 64
    %v578 = vpop.permute.xlu0 %577
    %579 = vrot.lane.b32.xlu0 %v566, 64
    %v580 = vpop.permute.xlu0 %579
    %581 = vrot.lane.b32.xlu0 %v569, 64
    %v582 = vpop.permute.xlu0 %581
    %v587 = vsel %vm32, %v511, %v576
    %v588 = vsel %vm32, %v514, %v578
    %v589 = vsel %vm32, %v517, %v580
    %v590 = vsel %vm32, %v520, %v582
    %v591 = vmul.f32 %v587, %v471
    %v592 = vmul.f32 %v588, %v471
    %v593 = vmul.f32 %v589, %v471
    %v594 = vmul.f32 %v590, %v471
    %595 = vst [vmem:[#allocation2] sm:$0xff] %v591
    %596 = vst [vmem:[#allocation2 + $0x8] sm:$0xff] %v592
    %597 = vst [vmem:[#allocation2 + $0x10] sm:$0xff] %v593
    %598 = vst [vmem:[#allocation2 + $0x18] sm:$0xff] %v594
    // Predicated region
    $region26: #{tpu_custom_call.1} parent=1 // pred_check
      _
    $region27: #{tpu_custom_call.1} parent=1 // pred_check_branch
      %600 = sbr.rel (0) target = $region29
    $region28: #{tpu_custom_call.1} parent=1 // pred_region
      %602 = vsyncadd [#allocation3], 0
      %s603 = sshll.u32 [#allocation2], 4
      %s604 = int_to_ptr.vmem [resolvable:$true] %s603
      %s605 = sshll.u32 %s6, 4
      %s606 = int_to_ptr.hbm [resolvable:$true] %s605
      %611 = dma.vmem_to_hbm [thread:$0]  %s604, 512, %s606, [#allocation3], 128, 128, 8
    $region29: #{tpu_custom_call.1} parent=1 // pred_fallthru
      _
    // Predicated region
    $region30: #{tpu_custom_call.1} parent=1 // pred_check
      _
    $region31: #{tpu_custom_call.1} parent=1 // pred_check_branch
      %613 = sbr.rel (0) target = $region33
    $region32: #{tpu_custom_call.1} parent=1 // pred_region
      %615 = dma.done [#allocation3], 512
    $region33: #{tpu_custom_call.1} parent=1 // pred_fallthru
      _
    %616 = vsyncpa [#allocation3], 1

</llo_original>
